<compile_context>
chip_gen: v5e
topology: v5e:2x2
jax: 0.10.0
libtpu: 0.0.40
codegen_flags: <defaults>
</compile_context>

<pallas_src>
import jax
import jax.numpy as jnp
from jax.experimental import pallas as pl
from jax.experimental.pallas import tpu as pltpu


def _make_kernel(S, ts):
    """Kernel factory; S and ts are captured statically for tail masking."""
    has_tail = (S % ts) != 0

    def kernel(h_ref, m_ref, o_ref, cnt_ref):
        # h_ref:   (tb, ts, th)  hidden-state tile (input dtype, NOT upcast)
        # m_ref:   (tb, 1, ts)   lane-dense mask tile (input dtype)
        # o_ref:   (tb, 1, th)   f32 output block; doubles as the accumulator
        # cnt_ref: (tb, 1, 1)    f32 token-count accumulator
        s = pl.program_id(2)

        @pl.when(s == 0)
        def _init():
            o_ref[...] = jnp.zeros_like(o_ref)
            cnt_ref[...] = jnp.zeros_like(cnt_ref)

        h = h_ref[...]
        m = m_ref[...]

        if has_tail:
            # Zero contributions from the ragged tail of the last S block.
            # Mask the mask (correct count + sum) and the hidden tile
            # (protects against non-finite stale VMEM in the padded region).
            lane_pos = s * ts + jax.lax.broadcasted_iota(jnp.int32, (1, 1, ts), 2)
            m = jnp.where(lane_pos < S, m, jnp.zeros_like(m))
            sub_pos = s * ts + jax.lax.broadcasted_iota(jnp.int32, (1, ts, 1), 1)
            h = jnp.where(sub_pos < S, h, jnp.zeros_like(h))

        # Masked sum over this sequence tile as an MXU batched matvec,
        # accumulated in f32 directly into the VMEM-resident output block.
        o_ref[...] += jnp.einsum(
            "bqs,bsh->bqh", m, h, preferred_element_type=jnp.float32
        )
        # Token count for this tile (f32 sum is exact for realistic S).
        cnt_ref[...] += jnp.sum(m.astype(jnp.float32), axis=2, keepdims=True)

        @pl.when(s == pl.num_programs(2) - 1)
        def _finalize():
            # torch.clamp(sum_mask, min=1e-9); exact divide (only tb rows).
            o_ref[...] = o_ref[...] / jnp.maximum(cnt_ref[...], 1e-9)

    return kernel


def _vmem_capacity_bytes():
    try:
        cap = getattr(pltpu.get_tpu_info(), "vmem_capacity_bytes", None)
        if cap:
            return int(cap)
    except Exception:
        pass
    return 64 * 1024 * 1024  # conservative (v7x per-TensorCore VMEM)


def _round_down_mult(x, m):
    return (x // m) * m


def _choose_tiles(B, S, H, itemsize, per_buf_budget):
    """Pick (tb, ts, th) so a single hidden buffer fits `per_buf_budget`."""
    # Batch tile: keep >= 2 batch blocks whenever B >= 2 so the "parallel"
    # batch axis has work for both v7x TensorCores (harmless on 1-TC chips).
    tb = min(B, 8)
    if B >= 2:
        tb = min(tb, (B + 1) // 2)

    th = H
    # No batch parallelism (B == 1): split H instead, if it is 128-tileable.
    if B == 1 and H % 128 == 0 and H >= 256:
        th = max(128, _round_down_mult(H // 2, 128))

    def seq_tile(th_):
        # ts is the mask block's lane dim -> multiple of 128 or the full S.
        cap = per_buf_budget // max(1, tb * th_ * itemsize)
        if cap >= S or S <= 128:
            return S
        return max(128, _round_down_mult(min(cap, S), 128))

    ts = seq_tile(th)

    def buf_bytes():
        return tb * ts * th * itemsize

    # If the minimum sequence tile still blows the budget, tile H (only when a
    # multiple-of-128 split is possible), then shrink the batch tile.
    while buf_bytes() > per_buf_budget and H % 128 == 0 and th > 128:
        th = max(128, _round_down_mult(th // 2, 128))
        ts = seq_tile(th)
    while buf_bytes() > per_buf_budget and tb > 1:
        tb = max(1, tb // 2)
        ts = seq_tile(th)

    return tb, ts, th


def mean_pooling(last_hidden_state, attention_mask, *, block_s=None):
    """Pallas implementation of MeanPooling.forward.

    last_hidden_state: [B, S, H]
    attention_mask:    [B, S]
    returns:           [B, H] float32  (torch does its math in float())
    """
    B, S, H = last_hidden_state.shape
    dtype = last_hidden_state.dtype
    itemsize = jnp.dtype(dtype).itemsize

    vmem_capacity = _vmem_capacity_bytes()
    # ~16 MiB per (double-buffered) hidden tile keeps us >=85% of HBM roofline
    # on all generations while leaving headroom inside v7x's 64 MiB VMEM.
    per_buf_budget = min(16 << 20, vmem_capacity // 4)

    tb, ts, th = _choose_tiles(B, S, H, itemsize, per_buf_budget)
    if block_s is not None and block_s < S:  # test/tuning override
        ts = max(128, _round_down_mult(block_s, 128))

    grid = (pl.cdiv(B, tb), pl.cdiv(H, th), pl.cdiv(S, ts))

    # Lane-dense mask layout, same dtype as the hidden states so the masked
    # sum runs on the MXU without upcasting the hidden tile.
    mask3 = attention_mask.astype(dtype).reshape(B, 1, S)

    # Explicit VMEM limit from the actual footprint (double-buffered tiles +
    # scratch) instead of relying on the 16/32 MiB scoped defaults.
    hidden_buf = tb * ts * th * itemsize
    mask_buf = tb * max(ts, 128) * itemsize
    out_buf = tb * th * 4
    cnt_buf = 8 * 128 * 4
    footprint = 2 * (hidden_buf + mask_buf + out_buf) + cnt_buf
    vmem_limit = int(min(vmem_capacity,
                         max(32 << 20, int(footprint * 1.25) + (2 << 20))))

    cost = pl.CostEstimate(
        flops=2 * B * S * H,
        transcendentals=0,
        bytes_accessed=B * S * H * itemsize + grid[1] * B * S * itemsize + B * H * 4,
    )

    out = pl.pallas_call(
        _make_kernel(S, ts),
        out_shape=jax.ShapeDtypeStruct((B, 1, H), jnp.float32),
        grid_spec=pltpu.PrefetchScalarGridSpec(
            num_scalar_prefetch=0,
            grid=grid,
            in_specs=[
                pl.BlockSpec((tb, ts, th), lambda b, h, s: (b, s, h)),  # hidden
                pl.BlockSpec((tb, 1, ts), lambda b, h, s: (b, 0, s)),   # mask
            ],
            out_specs=pl.BlockSpec((tb, 1, th), lambda b, h, s: (b, 0, h)),
            scratch_shapes=[
                pltpu.VMEM((tb, 1, 1), jnp.float32),   # token-count accumulator
            ],
        ),
        compiler_params=pltpu.CompilerParams(
            # batch & hidden axes parallel (v7x: sharded across both TCs);
            # sequence reduction axis last and arbitrary (output block is the
            # accumulator across it).
            dimension_semantics=("parallel", "parallel", "arbitrary"),
            vmem_limit_bytes=vmem_limit,
        ),
        cost_estimate=cost,
    )(last_hidden_state, mask3)

    return out.reshape(B, H)


def _reference(last_hidden_state, attention_mask):
    m = attention_mask.astype(jnp.float32)[..., None]
    h = last_hidden_state.astype(jnp.float32)
    return jnp.sum(h * m, axis=1) / jnp.maximum(jnp.sum(m, axis=1), 1e-9)


if __name__ == "__main__":
    key = jax.random.PRNGKey(0)

    # --- test 1: small canonical shape --------------------------------------
    B, S, H = 2, 8, 32
    k1, k2, k3, k4 = jax.random.split(key, 4)
    last_hidden_state = jax.random.normal(k1, (B, S, H), dtype=jnp.float32)
    attention_mask = (jax.random.uniform(k2, (B, S)) > 0.3).astype(jnp.int32)

    result = jax.block_until_ready(mean_pooling(last_hidden_state, attention_mask))
    ref = _reference(last_hidden_state, attention_mask)
    assert result.shape == (B, H)
    # tolerance covers the MXU f32 multi-pass matmul path (divide is exact)
    assert jnp.allclose(result, ref, atol=2e-3, rtol=2e-3)

    # --- test 2: non-multiple-of-128 S exercising the cdiv + tail-mask path --
    B2, S2, H2 = 2, 200, 128
    h2 = jax.random.normal(k3, (B2, S2, H2), dtype=jnp.float32)
    m2 = (jax.random.uniform(k4, (B2, S2)) > 0.3).astype(jnp.int32)
    result2 = jax.block_until_ready(mean_pooling(h2, m2, block_s=128))
    ref2 = _reference(h2, m2)
    assert result2.shape == (B2, H2)
    assert jnp.allclose(result2, ref2, atol=2e-3, rtol=2e-3)

    print("KERNEL_OK")
</pallas_src>

<mosaic_0001>
module attributes {stable_mosaic.version = 11 : i64} {
  func.func @kernel(%arg0: i32, %arg1: i32, %arg2: i32, %arg3: memref<1x8x32xf32, #tpu.memory_space<vmem>>, %arg4: memref<1x1x8xf32, #tpu.memory_space<vmem>>, %arg5: memref<1x1x32xf32, #tpu.memory_space<vmem>>, %arg6: memref<1x1x1xf32, #tpu.memory_space<vmem>>) attributes {dimension_semantics = [#tpu.dimension_semantics<parallel>, #tpu.dimension_semantics<parallel>, #tpu.dimension_semantics<arbitrary>], iteration_bounds = array<i64: 2, 1, 1>, scalar_prefetch = 0 : i64, scratch_operands = 1 : i64, tpu.core_type = #tpu.core_type<tc>, window_params = [{transform_indices = @transform_0, window_bounds = array<i64: 1, 8, 32>}, {transform_indices = @transform_1, window_bounds = array<i64: 1, 1, 8>}, {transform_indices = @transform_2, window_bounds = array<i64: 1, 1, 32>}]} {
    %c0_i32 = arith.constant 0 : i32
    %0 = arith.cmpi eq, %arg2, %c0_i32 : i32
    %1 = arith.extui %0 : i1 to i32
    %c0_i32_0 = arith.constant 0 : i32
    %2 = arith.cmpi ne, %1, %c0_i32_0 : i32
    scf.if %2 {
      %cst_21 = arith.constant 0.000000e+00 : f32
      %17 = vector.broadcast %cst_21 : f32 to vector<1x1x32xf32>
      %c0_22 = arith.constant 0 : index
      %c0_23 = arith.constant 0 : index
      %c0_24 = arith.constant 0 : index
      %18 = vector.load %arg5[%c0_22, %c0_23, %c0_24] : memref<1x1x32xf32, #tpu.memory_space<vmem>>, vector<1x1x32xf32>
      tpu.vector_store %arg5[%c0_22, %c0_23, %c0_24], %17 {strides = array<i32>} : memref<1x1x32xf32, #tpu.memory_space<vmem>>, vector<1x1x32xf32>,
      %cst_25 = arith.constant 0.000000e+00 : f32
      %19 = vector.broadcast %cst_25 : f32 to vector<1x1x1xf32>
      %c0_26 = arith.constant 0 : index
      %c0_27 = arith.constant 0 : index
      %c0_28 = arith.constant 0 : index
      %20 = vector.load %arg6[%c0_26, %c0_27, %c0_28] : memref<1x1x1xf32, #tpu.memory_space<vmem>>, vector<1x1x1xf32>
      tpu.vector_store %arg6[%c0_26, %c0_27, %c0_28], %19 {strides = array<i32>} : memref<1x1x1xf32, #tpu.memory_space<vmem>>, vector<1x1x1xf32>,
    } else {
    }
    %c0 = arith.constant 0 : index
    %c0_1 = arith.constant 0 : index
    %c0_2 = arith.constant 0 : index
    %3 = vector.load %arg3[%c0, %c0_1, %c0_2] : memref<1x8x32xf32, #tpu.memory_space<vmem>>, vector<1x8x32xf32>
    %c0_3 = arith.constant 0 : index
    %c0_4 = arith.constant 0 : index
    %c0_5 = arith.constant 0 : index
    %4 = vector.load %arg4[%c0_3, %c0_4, %c0_5] : memref<1x1x8xf32, #tpu.memory_space<vmem>>, vector<1x1x8xf32>
    %c0_6 = arith.constant 0 : index
    %c0_7 = arith.constant 0 : index
    %c0_8 = arith.constant 0 : index
    %5 = vector.load %arg5[%c0_6, %c0_7, %c0_8] : memref<1x1x32xf32, #tpu.memory_space<vmem>>, vector<1x1x32xf32>
    "tpu.trace_start"() <{level = 10 : i32, message = "bqs,bsh->bqh"}> : () -> ()
    %cst = arith.constant dense<0.000000e+00> : vector<1x1x32xf32>
    %6 = tpu.matmul %4, %3, %cst {dimension_numbers = #tpu.dot_dimension_numbers<[2], [1], [1], [2], [0, 0, 0, 1, 1, 2], [0], [0]>} : vector<1x1x8xf32>, vector<1x8x32xf32>, vector<1x1x32xf32> -> vector<1x1x32xf32>
    "tpu.trace_stop"() : () -> ()
    %7 = arith.addf %5, %6 : vector<1x1x32xf32>
    %c0_9 = arith.constant 0 : index
    %c0_10 = arith.constant 0 : index
    %c0_11 = arith.constant 0 : index
    %8 = vector.load %arg5[%c0_9, %c0_10, %c0_11] : memref<1x1x32xf32, #tpu.memory_space<vmem>>, vector<1x1x32xf32>
    tpu.vector_store %arg5[%c0_9, %c0_10, %c0_11], %7 {strides = array<i32>} : memref<1x1x32xf32, #tpu.memory_space<vmem>>, vector<1x1x32xf32>,
    %c0_12 = arith.constant 0 : index
    %c0_13 = arith.constant 0 : index
    %c0_14 = arith.constant 0 : index
    %9 = vector.load %arg6[%c0_12, %c0_13, %c0_14] : memref<1x1x1xf32, #tpu.memory_space<vmem>>, vector<1x1x1xf32>
    %cst_15 = arith.constant dense<0.000000e+00> : vector<1x1xf32>
    %10 = vector.multi_reduction <add>, %4, %cst_15 [2] : vector<1x1x8xf32> to vector<1x1xf32>
    %11 = vector.shape_cast %10 : vector<1x1xf32> to vector<1x1x1xf32>
    %12 = arith.addf %9, %11 : vector<1x1x1xf32>
    %c0_16 = arith.constant 0 : index
    %c0_17 = arith.constant 0 : index
    %c0_18 = arith.constant 0 : index
    %13 = vector.load %arg6[%c0_16, %c0_17, %c0_18] : memref<1x1x1xf32, #tpu.memory_space<vmem>>, vector<1x1x1xf32>
    tpu.vector_store %arg6[%c0_16, %c0_17, %c0_18], %12 {strides = array<i32>} : memref<1x1x1xf32, #tpu.memory_space<vmem>>, vector<1x1x1xf32>,
    %c0_i32_19 = arith.constant 0 : i32
    %14 = arith.cmpi eq, %arg2, %c0_i32_19 : i32
    %15 = arith.extui %14 : i1 to i32
    %c0_i32_20 = arith.constant 0 : i32
    %16 = arith.cmpi ne, %15, %c0_i32_20 : i32
    scf.if %16 {
      %c0_21 = arith.constant 0 : index
      %c0_22 = arith.constant 0 : index
      %c0_23 = arith.constant 0 : index
      %17 = vector.load %arg5[%c0_21, %c0_22, %c0_23] : memref<1x1x32xf32, #tpu.memory_space<vmem>>, vector<1x1x32xf32>
      %c0_24 = arith.constant 0 : index
      %c0_25 = arith.constant 0 : index
      %c0_26 = arith.constant 0 : index
      %18 = vector.load %arg6[%c0_24, %c0_25, %c0_26] : memref<1x1x1xf32, #tpu.memory_space<vmem>>, vector<1x1x1xf32>
      %cst_27 = arith.constant 9.99999971E-10 : f32
      %19 = vector.broadcast %cst_27 : f32 to vector<1x1x1xf32>
      %20 = arith.maximumf %18, %19 : vector<1x1x1xf32>
      %21 = vector.broadcast %20 : vector<1x1x1xf32> to vector<1x1x32xf32>
      %22 = arith.divf %17, %21 : vector<1x1x32xf32>
      %c0_28 = arith.constant 0 : index
      %c0_29 = arith.constant 0 : index
      %c0_30 = arith.constant 0 : index
      %23 = vector.load %arg5[%c0_28, %c0_29, %c0_30] : memref<1x1x32xf32, #tpu.memory_space<vmem>>, vector<1x1x32xf32>
      tpu.vector_store %arg5[%c0_28, %c0_29, %c0_30], %22 {strides = array<i32>} : memref<1x1x32xf32, #tpu.memory_space<vmem>>, vector<1x1x32xf32>,
    } else {
    }
    return
  }
  func.func @transform_0(%arg0: i32, %arg1: i32, %arg2: i32) -> (i32, i32, i32) {
    %c0_i32 = arith.constant 0 : i32
    return %arg0, %arg2, %arg1 : i32, i32, i32
  }
  func.func @transform_1(%arg0: i32, %arg1: i32, %arg2: i32) -> (i32, i32, i32) {
    %c0_i32 = arith.constant 0 : i32
    %c0_i32_0 = arith.constant 0 : i32
    return %arg0, %c0_i32, %arg2 : i32, i32, i32
  }
  func.func @transform_2(%arg0: i32, %arg1: i32, %arg2: i32) -> (i32, i32, i32) {
    %c0_i32 = arith.constant 0 : i32
    %c0_i32_0 = arith.constant 0 : i32
    return %arg0, %c0_i32, %arg1 : i32, i32, i32
  }
}

</mosaic_0001>

<llo_original>
// kernel: tpu_custom_call.1
$region0: #{tpu_custom_call.1}
  #allocation0 [shape = 'u32[]', space=smem, size = 0x4, offset = 0x4, fixed_abs, tag = 'smem constant byte address 0x4 - core index']
  #allocation1 [shape = 'u32[72,128]{1,0:T(1,128)}', space=vmem, size = 0x9000, scoped, tag = 'internal scratch']
  #allocation2 [shape = 'f32[1,1,1]{2,1,0:T(1,128)}', space=vmem, size = 0x200, scoped, tag = 'scratch operand']
  %s0 = inlined_call_operand.hbm [shape: f32[2,8,32], index: 0, kind: input, shape index: {}]
  %s1 = inlined_call_operand.hbm [shape: f32[2,1,8], index: 1, kind: input, shape index: {}]
  %s2 = inlined_call_operand.hbm [shape: f32[2,1,32], index: 2, kind: output, shape index: {}]
  %s3 = sld [smem:[#allocation0]]
  $region57: #{tpu_custom_call.1} parent=0
    _
  %s5 = ssub.s32 1, %s3
  %s6 = scalar_select 0, %s5, %s3
  $region1: #{tpu_custom_call.1} parent=0
    #allocation3 [shape = 'u8[8192]{0}', space=vmem, size = 0x2000, scoped, tag = 'input window, operand 0']
    #allocation4 [shape = 's32[2]{0}', space=sflag, size = 0x8, scoped, tag = 'scoped memory for tpu_custom_call.1']
    #allocation5 [shape = 's32[2]{0}', space=sflag, size = 0x8, scoped, tag = 'scoped memory for tpu_custom_call.1']
    #allocation6 [shape = 'u8[1024]{0}', space=vmem, size = 0x400, scoped, tag = 'input window, operand 1']
    #allocation7 [shape = 's32[2]{0}', space=sflag, size = 0x8, scoped, tag = 'scoped memory for tpu_custom_call.1']
    #allocation8 [shape = 'u8[1024]{0}', space=vmem, size = 0x400, scoped, tag = 'output window, operand 0']
    %7 = vsyncpa [#allocation4], 0
    %s8 = scalar_lea.sflag [#allocation4], 1
    %9 = vsyncpa %s8, 0
    %10 = vsyncpa [#allocation7], 0
    %s11 = scalar_lea.sflag [#allocation7], 1
    %12 = vsyncpa %s11, 0
    %13 = vsyncpa [#allocation5], 0
    %s14 = scalar_lea.sflag [#allocation5], 1
    %15 = vsyncpa %s14, 0
    loop: start=0, step=1, limit=4
    $region2: #{tpu_custom_call.1} parent=1 // loop_pre_header
      _
    $region3: #{tpu_custom_call.1} parent=1 // loop_header
      %s17 = sphi 0, %s21
      %p18 = scmp.ge.s32.totalorder %s17, 4
      %s24 = sphi 0, %s43
      %s25 = sphi 0, %s39
      %s26 = sphi 0, %s35
      %s27 = sphi 0, %s24
      %s28 = sphi 0, %s25
      %s29 = sphi 0, %s26
      %s30 = sphi 0, %s27
      %s31 = sphi 0, %s28
      %s32 = sphi 0, %s29
      %s50 = sphi 0, %s52
      %s53 = sphi 0, %s50
      %s54 = sphi 0, %s53
      %s70 = sphi 0, %s54
      %s78 = sphi 0, %s80
      %s81 = sphi 0, %s78
      %s82 = sphi 0, %s81
      %s98 = sphi 0, %s82
      %s106 = sphi 0, %s108
      %s109 = sphi 0, %s106
      %s110 = sphi 0, %s109
      %s126 = sphi 0, %s110
    $region4: #{tpu_custom_call.1} parent=1 // loop_header_branch
      %20 = sbr.rel (%p18) target = $region8
    $region5: #{tpu_custom_call.1} parent=1 // loop_body
      %s22 = ssub.s32 %s17, 1
      %s23 = ssub.s32 %s17, 2
      %s33 = sadd.s32 1, %s26
      %p34 = scmp.ge.s32.totalorder %s33, 1
      %s35 = scalar_select %p34, 0, %s33
      %s36 = sadd.s32 1, %s25
      %s37 = scalar_select %p34, %s36, %s25
      %p38 = scmp.ge.s32.totalorder %s37, 1
      %s39 = scalar_select %p38, 0, %s37
      %s40 = sadd.s32 1, %s24
      %s41 = scalar_select %p38, %s40, %s24
      %p42 = scmp.ge.s32.totalorder %s41, 2
      %s43 = scalar_select %p42, 0, %s41
      %s44 = ssub.s32 %s24, %s43
      %s45 = ssub.s32 %s26, %s35
      %s46 = sor.u32 %s44, %s45
      %s47 = ssub.s32 %s25, %s39
      %s48 = sor.u32 %s46, %s47
      %p49 = scmp.eq.s32.totalorder %s48, 0
      %s51 = sadd.s32 %s50, 1
      %s52 = scalar_select %p49, %s50, %s51
      %p55 = pneg %p49
      %p56 = scmp.eq.s32.totalorder %s17, 1
      %p57 = por %p55, %p56
      %p58 = scmp.ne.s32.totalorder %s50, %s53
      %p59 = scmp.eq.s32.totalorder %s17, 0
      %p60 = por %p58, %p59
      %p61 = scmp.ne.s32.totalorder %s50, %s53
      %p62 = scmp.eq.s32.totalorder %s22, 1
      %p63 = por %p61, %p62
      %p64 = scmp.ne.s32.totalorder %s53, %s54
      %p65 = scmp.eq.s32.totalorder %s22, 0
      %p66 = por %p64, %p65
      %p67 = scmp.ne.s32.totalorder %s53, %s54
      %p68 = scmp.eq.s32.totalorder %s23, 1
      %p69 = por %p67, %p68
      %p71 = scmp.ne.s32.totalorder %s54, %s70
      %p72 = scmp.eq.s32.totalorder %s23, 0
      %p73 = por %p71, %p72
      %s74 = ssub.s32 %s24, %s43
      %s75 = ssub.s32 %s26, %s35
      %s76 = sor.u32 %s74, %s75
      %p77 = scmp.eq.s32.totalorder %s76, 0
      %s79 = sadd.s32 %s78, 1
      %s80 = scalar_select %p77, %s78, %s79
      %p83 = pneg %p77
      %p84 = scmp.eq.s32.totalorder %s17, 1
      %p85 = por %p83, %p84
      %p86 = scmp.ne.s32.totalorder %s78, %s81
      %p87 = scmp.eq.s32.totalorder %s17, 0
      %p88 = por %p86, %p87
      %p89 = scmp.ne.s32.totalorder %s78, %s81
      %p90 = scmp.eq.s32.totalorder %s22, 1
      %p91 = por %p89, %p90
      %p92 = scmp.ne.s32.totalorder %s81, %s82
      %p93 = scmp.eq.s32.totalorder %s22, 0
      %p94 = por %p92, %p93
      %p95 = scmp.ne.s32.totalorder %s81, %s82
      %p96 = scmp.eq.s32.totalorder %s23, 1
      %p97 = por %p95, %p96
      %p99 = scmp.ne.s32.totalorder %s82, %s98
      %p100 = scmp.eq.s32.totalorder %s23, 0
      %p101 = por %p99, %p100
      %s102 = ssub.s32 %s24, %s43
      %s103 = ssub.s32 %s25, %s39
      %s104 = sor.u32 %s102, %s103
      %p105 = scmp.eq.s32.totalorder %s104, 0
      %s107 = sadd.s32 %s106, 1
      %s108 = scalar_select %p105, %s106, %s107
      %p111 = pneg %p105
      %p112 = scmp.eq.s32.totalorder %s17, 1
      %p113 = por %p111, %p112
      %p114 = scmp.ne.s32.totalorder %s106, %s109
      %p115 = scmp.eq.s32.totalorder %s17, 0
      %p116 = por %p114, %p115
      %p117 = scmp.ne.s32.totalorder %s106, %s109
      %p118 = scmp.eq.s32.totalorder %s22, 1
      %p119 = por %p117, %p118
      %p120 = scmp.ne.s32.totalorder %s109, %s110
      %p121 = scmp.eq.s32.totalorder %s22, 0
      %p122 = por %p120, %p121
      %p123 = scmp.ne.s32.totalorder %s109, %s110
      %p124 = scmp.eq.s32.totalorder %s23, 1
      %p125 = por %p123, %p124
      %p127 = scmp.ne.s32.totalorder %s110, %s126
      %p128 = scmp.eq.s32.totalorder %s23, 0
      %p129 = por %p127, %p128
      %p130 = scmp.le.s32.totalorder 1, %s17
      %p131 = scmp.lt.s32.totalorder %s17, 3
      %p132 = pnand %p130, %p131
      %p133 = pneg %p132
      // Predicated region
      $region9: #{tpu_custom_call.1} parent=5 // pred_check
        _
      $region10: #{tpu_custom_call.1} parent=5 // pred_check_branch
        %135 = sbr.rel (%p132) target = $region12
      $region11: #{tpu_custom_call.1} parent=5 // pred_region
        %s136 = ssub.s32 %s17, 1
      $region12: #{tpu_custom_call.1} parent=5 // pred_fallthru
        _
      %p137 = scmp.lt.s32.totalorder %s17, 2
      // Predicated region
      $region13: #{tpu_custom_call.1} parent=5 // pred_check
        %p138 = pneg %p137
      $region14: #{tpu_custom_call.1} parent=5 // pred_check_branch
        %140 = sbr.rel (%p138) target = $region16
      $region15: #{tpu_custom_call.1} parent=5 // pred_region
        // Predicated region
        $region17: #{tpu_custom_call.1} parent=15 // pred_check
          %p141 = pneg %p60
        $region18: #{tpu_custom_call.1} parent=15 // pred_check_branch
          %143 = sbr.rel (%p141) target = $region20
        $region19: #{tpu_custom_call.1} parent=15 // pred_region
          %s144 = sand.u32 %s50, 1
          %s145 = scalar_lea.sflag [#allocation4], %s144
          %s146 = sand.u32 %s50, 1
          %s147 = smul.addr %s146, 8
          %s148 = scalar_lea.vmem [#allocation3], %s147
          %150 = vsyncadd %s145, 0
          %s151 = sadd.s32 %s25, %s26
          %s152 = sadd.s32 %s151, %s24
          %s153 = smul.addr %s152, 8
          %s154 = scalar_lea.hbm %s0, %s153
          %s156 = sshll.u32 %s154, 4
          %s157 = int_to_ptr.hbm [resolvable:$true] %s156
          %s158 = sshll.u32 %s148, 4
          %s159 = int_to_ptr.vmem [resolvable:$true] %s158
          %161 = dma.hbm_to_vmem [thread:$0]  %s157, 128, %s159, %s145
        $region20: #{tpu_custom_call.1} parent=15 // pred_fallthru
          _
        // Predicated region
        $region21: #{tpu_custom_call.1} parent=15 // pred_check
          %p162 = pneg %p88
        $region22: #{tpu_custom_call.1} parent=15 // pred_check_branch
          %164 = sbr.rel (%p162) target = $region24
        $region23: #{tpu_custom_call.1} parent=15 // pred_region
          %s165 = sand.u32 %s78, 1
          %s166 = scalar_lea.sflag [#allocation7], %s165
          %s167 = sand.u32 %s78, 1
          %s168 = scalar_lea.vmem [#allocation6], %s167
          %170 = vsyncadd %s166, 0
          %s171 = sadd.s32 %s26, %s24
          %s172 = scalar_lea.hbm %s1, %s171
          %s174 = sshll.u32 %s172, 4
          %s175 = int_to_ptr.hbm [resolvable:$true] %s174
          %s176 = sshll.u32 %s168, 4
          %s177 = int_to_ptr.vmem [resolvable:$true] %s176
          %179 = dma.hbm_to_vmem [thread:$0]  %s175, 16, %s177, %s166
        $region24: #{tpu_custom_call.1} parent=15 // pred_fallthru
          _
      $region16: #{tpu_custom_call.1} parent=5 // pred_fallthru
        _
      %p180 = scmp.le.s32.totalorder 1, %s17
      %p181 = scmp.lt.s32.totalorder %s17, 3
      %p182 = pnand %p180, %p181
      %p183 = pneg %p182
      // Predicated region
      $region25: #{tpu_custom_call.1} parent=5 // pred_check
        _
      $region26: #{tpu_custom_call.1} parent=5 // pred_check_branch
        %185 = sbr.rel (%p182) target = $region28
      $region27: #{tpu_custom_call.1} parent=5 // pred_region
        %s186 = ssub.s32 %s17, 1
        %s187 = sand.u32 %s53, 1
        %s188 = scalar_lea.sflag [#allocation4], %s187
        %s189 = sand.u32 %s53, 1
        %s190 = smul.addr %s189, 8
        %s191 = scalar_lea.vmem [#allocation3], %s190
        // Predicated region
        $region29: #{tpu_custom_call.1} parent=27 // pred_check
          %p192 = pneg %p66
        $region30: #{tpu_custom_call.1} parent=27 // pred_check_branch
          %194 = sbr.rel (%p192) target = $region32
        $region31: #{tpu_custom_call.1} parent=27 // pred_region
          %196 = dma.done %s188, 128
        $region32: #{tpu_custom_call.1} parent=27 // pred_fallthru
          _
        %s197 = sand.u32 %s81, 1
        %s198 = scalar_lea.sflag [#allocation7], %s197
        %s199 = sand.u32 %s81, 1
        %s200 = scalar_lea.vmem [#allocation6], %s199
        // Predicated region
        $region33: #{tpu_custom_call.1} parent=27 // pred_check
          %p201 = pneg %p94
        $region34: #{tpu_custom_call.1} parent=27 // pred_check_branch
          %203 = sbr.rel (%p201) target = $region36
        $region35: #{tpu_custom_call.1} parent=27 // pred_region
          %205 = dma.done %s198, 16
        $region36: #{tpu_custom_call.1} parent=27 // pred_fallthru
          _
        %s206 = sand.u32 %s53, 1
        %s207 = scalar_lea.sflag [#allocation4], %s206
        %s208 = sand.u32 %s53, 1
        %s209 = smul.addr %s208, 8
        %s210 = scalar_lea.vmem [#allocation3], %s209
        %p211 = pneg %p66
        %p212 = pneg %p63
        %s213 = sand.u32 %s81, 1
        %s214 = scalar_lea.sflag [#allocation7], %s213
        %s215 = sand.u32 %s81, 1
        %s216 = scalar_lea.vmem [#allocation6], %s215
        %p217 = pneg %p94
        %p218 = pneg %p91
        %p219 = pneg %p122
        %p220 = pneg %p119
        %s221 = sand.u32 %s109, 1
        %s222 = scalar_lea.sflag [#allocation5], %s221
        %s223 = sand.u32 %s109, 1
        %s224 = scalar_lea.vmem [#allocation8], %s223
        %p225 = scmp.eq.s32.totalorder %s29, 0
        // Predicated region
        $region37: #{tpu_custom_call.1} parent=27 // pred_check
          %p226 = pneg %p225
        $region38: #{tpu_custom_call.1} parent=27 // pred_check_branch
          %228 = sbr.rel (%p226) target = $region40
        $region39: #{tpu_custom_call.1} parent=27 // pred_region
          %vm229 = vcmask 253952
          %230 = vst.msk [vmem:[%s224] sm:$0x1] %vm229, 0.0
          %vm231 = vcmask 0
          %232 = vst.msk [vmem:[#allocation2] sm:$0x1] %vm231, 0.0
        $region40: #{tpu_custom_call.1} parent=27 // pred_fallthru
          _
        %v233 = vld [vmem:[%s191] sm:$0xff]
        %v234 = vld [vmem:[%s200] sm:$0x1]
        %v235 = vld [vmem:[%s224] sm:$0x1]
        %vm236 = vcmask 64512
        %v238 = vsel %vm236, %v234, 0
        %240 = vmatpush.msra.mxu0 0.0
        %241 = vmatpush.msra.mxu0 0.0
        %242 = vmatpush.msra.mxu0 0.0
        %243 = vmatpush.msra.mxu0 0.0
        %244 = vmatpush.msra.mxu0 0.0
        %245 = vmatpush.msra.mxu0 0.0
        %246 = vmatpush.msra.mxu0 0.0
        %247 = vmatpush.msra.mxu0 0.0
        %248 = vmatpush.msra.mxu0 0.0
        %249 = vmatpush.msra.mxu0 0.0
        %250 = vmatpush.msra.mxu0 0.0
        %251 = vmatpush.msra.mxu0 0.0
        %252 = vmatpush.msra.mxu0 0.0
        %253 = vmatpush.msra.mxu0 0.0
        %254 = vmatpush.msra.mxu0 0.0
        %255 = vmatpush.msra.mxu0 %v233
        %256 = vmatmul.f32.gmra.mxu0 %v238
        %v257 = vpop.f32.mrf.mxu0
        %v258 = vadd.f32 0.0, %v257
        %259 = vdwg.mxu0
        %v260 = vadd.f32 %v235, %v258
        %vm261 = vcmask 253952
        %262 = vst.msk [vmem:[%s224] sm:$0x1] %vm261, %v260
        %v263 = vld [vmem:[#allocation2] sm:$0x1]
        %vm264 = vcmask 57344
        %v265 = vsel %vm264, %v234, 0.0
        %266 = vadd.xlane.f32.xlu0 %v265
        %v267 = vpop.xlane.xlu0 %266
        %v268 = vadd.f32 %v263, %v267
        %vm269 = vcmask 0
        %270 = vst.msk [vmem:[#allocation2] sm:$0x1] %vm269, %v268
        // Predicated region
        $region41: #{tpu_custom_call.1} parent=27 // pred_check
          %p271 = pneg %p225
        $region42: #{tpu_custom_call.1} parent=27 // pred_check_branch
          %273 = sbr.rel (%p271) target = $region44
        $region43: #{tpu_custom_call.1} parent=27 // pred_region
          %v274 = vld [vmem:[%s224] sm:$0x1]
          %v275 = vld [vmem:[#allocation2] sm:$0x1]
          %v276 = vmax.f32 %v275, 1e-09
          %278 = vset.pattern.permute.xlu0 0
          %279 = vperm.xlu0 %278, %v276
          %v280 = vpop.permute.xlu0 %279
          %v282 = vperm.slane %v280, 0
          %v283 = vrcp.pop %v282
          %v284 = vmul.f32 %v282, %v283
          %v285 = vsub.f32 1.0, %v284
          %v286 = vmul.f32 %v283, %v285
          %v287 = vadd.f32 %v283, %v286
          %vm288 = vweird.f32 %v282
          %vm289 = vweird.f32 %v283
          %vm290 = vmor %vm288, %vm289
          %v291 = vsel %vm290, %v283, %v287
          %v292 = vand.u32 2147483647, %v282
          %vm293 = vcmp.eq.f32.partialorder %v292, 8.507059e+37
          %v294 = vand.u32 %v282, 2147483648
          %v295 = vor.u32 1.1754944e-38, %v294
          %v296 = vsel %vm293, %v295, %v291
          %v297 = vmul.f32 %v274, %v296
          %298 = vst.msk [vmem:[%s224] sm:$0x1] %vm261, %v297
        $region44: #{tpu_custom_call.1} parent=27 // pred_fallthru
          _
        %s299 = sand.u32 %s109, 1
        %s300 = scalar_lea.sflag [#allocation5], %s299
        %s301 = sand.u32 %s109, 1
        %s302 = scalar_lea.vmem [#allocation8], %s301
        // Predicated region
        $region45: #{tpu_custom_call.1} parent=27 // pred_check
          %p303 = pneg %p119
        $region46: #{tpu_custom_call.1} parent=27 // pred_check_branch
          %305 = sbr.rel (%p303) target = $region48
        $region47: #{tpu_custom_call.1} parent=27 // pred_region
          %307 = vsyncadd %s300, 0
          %s308 = sadd.s32 %s28, %s27
          %s309 = scalar_lea.hbm %s2, %s308
          %s311 = sshll.u32 %s302, 4
          %s312 = int_to_ptr.vmem [resolvable:$true] %s311
          %s313 = sshll.u32 %s309, 4
          %s314 = int_to_ptr.hbm [resolvable:$true] %s313
          %316 = dma.vmem_to_hbm [thread:$0]  %s312, 16, %s314, %s300
        $region48: #{tpu_custom_call.1} parent=27 // pred_fallthru
          _
      $region28: #{tpu_custom_call.1} parent=5 // pred_fallthru
        _
      %p317 = scmp.le.s32.totalorder 2, %s17
      // Predicated region
      $region49: #{tpu_custom_call.1} parent=5 // pred_check
        %p318 = pneg %p317
      $region50: #{tpu_custom_call.1} parent=5 // pred_check_branch
        %320 = sbr.rel (%p318) target = $region52
      $region51: #{tpu_custom_call.1} parent=5 // pred_region
        %s321 = ssub.s32 %s17, 2
        // Predicated region
        $region53: #{tpu_custom_call.1} parent=51 // pred_check
          %p322 = pneg %p125
        $region54: #{tpu_custom_call.1} parent=51 // pred_check_branch
          %324 = sbr.rel (%p322) target = $region56
        $region55: #{tpu_custom_call.1} parent=51 // pred_region
          %s325 = sand.u32 %s110, 1
          %s326 = scalar_lea.sflag [#allocation5], %s325
          %s327 = sand.u32 %s110, 1
          %s328 = scalar_lea.vmem [#allocation8], %s327
          %330 = dma.done %s326, 16
        $region56: #{tpu_custom_call.1} parent=51 // pred_fallthru
          _
      $region52: #{tpu_custom_call.1} parent=5 // pred_fallthru
        _
    $region6: #{tpu_custom_call.1} parent=1 // loop_footer
      %s21 = sadd.s32 1, %s17
    $region7: #{tpu_custom_call.1} parent=1 // loop_footer_branch
      %16 = sbr.rel target = $region3
    $region8: #{tpu_custom_call.1} parent=1 // loop_exit
      _
    %331 = vsyncpa [#allocation4], 1
    %s332 = scalar_lea.sflag [#allocation4], 1
    %333 = vsyncpa %s332, 1
    %334 = vsyncpa [#allocation7], 1
    %s335 = scalar_lea.sflag [#allocation7], 1
    %336 = vsyncpa %s335, 1
    %337 = vsyncpa [#allocation5], 1
    %s338 = scalar_lea.sflag [#allocation5], 1
    %339 = vsyncpa %s338, 1

</llo_original>
